<compile_context>
chip_gen: v7x
topology: tpu7x:2x2x1
jax: 0.10.0
libtpu: 0.0.40
codegen_flags: <defaults>
</compile_context>

<pallas_src>
import math
from functools import partial

import jax
import jax.numpy as jnp
from jax.experimental import pallas as pl
from jax.experimental.pallas import tpu as pltpu


def _round_up(x, m):
    return ((x + m - 1) // m) * m


def _omni_attention_kernel(x_ref, wfc_ref, bfc_ref, wh_ref, bh_ref, invt_ref,
                           out_ref, acc_ref, *, hw, thw, nhw, inv_hw,
                           kn_start, kn_size):
    """Grid = (batch_tiles, hw_tiles); hw axis is the (arbitrary) reduction."""
    k = pl.program_id(1)

    # ---- init the lane-wide accumulator at the start of each reduction ----
    @pl.when(k == 0)
    def _():
        acc_ref[...] = jnp.zeros_like(acc_ref)

    # ---- partial spatial sums: fold 128-lane groups with VPU adds only ----
    def accumulate(valid_w):
        # valid_w: statically-known number of valid lanes in this hw tile.
        ng = (valid_w + 127) // 128
        for g in range(ng):
            start = g * 128
            width = min(128, thw - start)           # readable lanes in block
            vwidth = min(valid_w - start, width)    # valid lanes of those
            blk = x_ref[:, :, start:start + width].astype(jnp.float32)
            if vwidth < width:                      # ragged tail -> mask
                lane = jax.lax.broadcasted_iota(jnp.int32, blk.shape, 2)
                blk = jnp.where(lane < vwidth, blk, 0.0)
            if width == 128:
                acc_ref[...] += blk
            else:
                acc_ref[:, :, 0:width] += blk

    rem = hw - (nhw - 1) * thw                      # lanes valid in last tile
    if rem == thw:                                  # every tile is full
        accumulate(thw)
    else:
        @pl.when(k < nhw - 1)
        def _():
            accumulate(thw)

        @pl.when(k == nhw - 1)
        def _():
            accumulate(rem)

    # ---- epilogue: pooled mean -> fc(+BN)+ReLU -> fused heads ------------
    @pl.when(k == nhw - 1)
    def _():
        # single cross-lane reduce (XLU) out of the hot loop
        pooled = jnp.sum(acc_ref[...], axis=-1) * inv_hw        # (TB, C)

        # fc (1x1 conv, BN folded in) + ReLU
        a = jnp.dot(pooled, wfc_ref[...],
                    preferred_element_type=jnp.float32) + bfc_ref[...]
        a = jnp.maximum(a, 0.0)                                  # (TB, A)

        # fused channel/filter/spatial/kernel projection, then /temperature
        h = (jnp.dot(a, wh_ref[...], preferred_element_type=jnp.float32)
             + bh_ref[...]) * invt_ref[0]                        # (TB, NPAD)

        # sigmoid everywhere except the kernel-attention columns, which get a
        # masked softmax (kept vreg-wide to avoid lane-misaligned slices).
        col = jax.lax.broadcasted_iota(jnp.int32, h.shape, 1)
        is_kn = (col >= kn_start) & (col < kn_start + kn_size)

        kn_logits = jnp.where(is_kn, h, -jnp.inf)
        m = jnp.max(kn_logits, axis=-1, keepdims=True)
        e = jnp.where(is_kn, jnp.exp(kn_logits - m), 0.0)
        sm = e / jnp.sum(e, axis=-1, keepdims=True)

        out_ref[...] = jnp.where(is_kn, sm, jax.nn.sigmoid(h))


class OmniAttentionPallas:
    """Pallas re-implementation of OmniAttention.forward (non-skip config)."""

    def __init__(self, in_planes, out_planes, kernel_size, groups=1,
                 reduction=0.0625, kernel_num=4, min_channel=16,
                 key=jax.random.PRNGKey(0)):
        attention_channel = max(int(in_planes * reduction), min_channel)
        self.in_planes = in_planes
        self.out_planes = out_planes
        self.kernel_size = kernel_size
        self.kernel_num = kernel_num
        self.attention_channel = attention_channel
        self.temperature = 1.0

        # Skip branches not implemented (see TODO at top of file).
        assert not (in_planes == groups and in_planes == out_planes)
        assert kernel_size != 1 and kernel_num != 1

        A = attention_channel
        C, Co = in_planes, out_planes
        K, KK = kernel_num, kernel_size * kernel_size
        self._ntot = C + Co + KK + K
        self._npad = max(128, _round_up(self._ntot, 128))

        ks = jax.random.split(key, 5)

        def kaiming_fan_out(k, out_c, in_c):
            # kaiming_normal_(mode='fan_out', nonlinearity='relu') for 1x1 conv
            std = math.sqrt(2.0 / out_c)
            return jax.random.normal(k, (out_c, in_c), jnp.float32) * std

        # ---- fc weight with BatchNorm (eval, init stats) folded in ----
        eps = 1e-5
        bn_scale = 1.0 / math.sqrt(1.0 + eps)             # weight=1, var=1
        self.w_fc = kaiming_fan_out(ks[0], A, C).T * bn_scale     # (C, A)
        self.b_fc = jnp.zeros((1, A), jnp.float32)                # BN shift (=0)

        # ---- fused head weight slab (A, NPAD) and bias slab (1, NPAD) ----
        w_heads = jnp.zeros((A, self._npad), jnp.float32)
        b_heads = jnp.zeros((1, self._npad), jnp.float32)
        wch = kaiming_fan_out(ks[1], C, A).T                      # (A, C)
        wfl = kaiming_fan_out(ks[2], Co, A).T                     # (A, Co)
        wsp = kaiming_fan_out(ks[3], KK, A).T                     # (A, KK)
        wkn = kaiming_fan_out(ks[4], K, A).T                      # (A, K)
        off = 0
        for w in (wch, wfl, wsp, wkn):
            w_heads = w_heads.at[:, off:off + w.shape[1]].set(w)
            off += w.shape[1]
        # conv biases are initialized to 0 -> b_heads stays zero.
        self.w_heads = w_heads
        self.b_heads = b_heads

    def update_temperature(self, temperature):
        self.temperature = float(temperature)

    def __call__(self, x):
        # x: (B, C_in, H, W), NCHW like the PyTorch module (f32 or bf16).
        B, C, H, W = x.shape
        assert C == self.in_planes
        A = self.attention_channel
        Co, K, KK = self.out_planes, self.kernel_num, self.kernel_size ** 2
        NPAD = self._npad
        HW = H * W

        x3 = x.reshape(B, C, HW)                       # free reshape, no pad
        xbytes = x3.dtype.itemsize

        # ---- tile sizes (generation-aware VMEM budget) -------------------
        TB = B if B <= 8 else 8                        # batch tile
        nb = -(-B // TB)
        C_pad = _round_up(C, 8)

        try:
            info = pltpu.get_tpu_info()
            vmem_cap = int(getattr(info, "vmem_capacity_bytes", 64 << 20))
        except Exception:                              # be conservative
            vmem_cap = 64 << 20
        if vmem_cap >= (100 << 20):                    # v5e / v6e (128 MiB)
            x_db_budget = 32 << 20
            vmem_limit_cap = 64 << 20
        else:                                          # v7x (64 MiB / core)
            x_db_budget = 16 << 20
            vmem_limit_cap = 40 << 20

        lane_budget = x_db_budget // (2 * TB * C_pad * xbytes)
        hw_cap = max(128, min(4096, (lane_budget // 128) * 128))
        if HW <= hw_cap:
            thw = HW                                   # one full-row tile
        else:
            thw = hw_cap                               # multiple of 128
        nhw = -(-HW // thw)

        # ---- explicit VMEM budget (double-buffered x & out + weights) ---
        thw_pad = _round_up(thw, 128)
        A_lane = _round_up(A, 128)
        est = (2 * TB * C_pad * thw_pad * xbytes
               + 2 * _round_up(TB, 8) * NPAD * 4
               + 2 * (C_pad * A_lane + 8 * A_lane
                      + _round_up(A, 8) * NPAD + 8 * NPAD) * 4
               + TB * C_pad * 128 * 4
               + (2 << 20))
        vmem_bytes = int(min(max(est, 4 << 20), vmem_limit_cap))
        if est > vmem_bytes:
            vmem_bytes = int(min(est, vmem_cap))

        inv_t = jnp.full((1,), 1.0 / self.temperature, jnp.float32)

        kern = partial(_omni_attention_kernel,
                       hw=HW, thw=thw, nhw=nhw, inv_hw=1.0 / HW,
                       kn_start=C + Co + KK, kn_size=K)

        grid_spec = pltpu.PrefetchScalarGridSpec(
            num_scalar_prefetch=0,
            grid=(nb, nhw),
            in_specs=[
                pl.BlockSpec((TB, C, thw), lambda b, k: (b, 0, k)),   # x
                pl.BlockSpec((C, A), lambda b, k: (0, 0)),            # w_fc
                pl.BlockSpec((1, A), lambda b, k: (0, 0)),            # b_fc
                pl.BlockSpec((A, NPAD), lambda b, k: (0, 0)),         # w_heads
                pl.BlockSpec((1, NPAD), lambda b, k: (0, 0)),         # b_heads
                pl.BlockSpec(memory_space=pltpu.MemorySpace.SMEM),    # 1/T
            ],
            out_specs=pl.BlockSpec((TB, NPAD), lambda b, k: (b, 0)),
            scratch_shapes=[pltpu.VMEM((TB, C, 128), jnp.float32)],
        )

        out = pl.pallas_call(
            kern,
            out_shape=jax.ShapeDtypeStruct((B, NPAD), jnp.float32),
            grid_spec=grid_spec,
            compiler_params=pltpu.CompilerParams(
                dimension_semantics=("parallel", "arbitrary"),
                vmem_limit_bytes=vmem_bytes),
        )(x3, self.w_fc, self.b_fc, self.w_heads, self.b_heads, inv_t)

        o1, o2, o3 = C, C + Co, C + Co + KK
        channel_attention = out[:, :o1].reshape(B, C, 1, 1)
        filter_attention = out[:, o1:o2].reshape(B, Co, 1, 1)
        spatial_attention = out[:, o2:o3].reshape(
            B, 1, 1, 1, self.kernel_size, self.kernel_size)
        kernel_attention = out[:, o3:o3 + K].reshape(B, K, 1, 1, 1, 1)
        return channel_attention, filter_attention, spatial_attention, kernel_attention


if __name__ == "__main__":
    key = jax.random.PRNGKey(0)
    k_x, k_w = jax.random.split(key)

    B, C_in, H, W = 2, 4, 16, 16
    out_planes, kernel_size, kernel_num = 8, 3, 4

    x = jax.random.normal(k_x, (B, C_in, H, W), jnp.float32)

    mod = OmniAttentionPallas(C_in, out_planes, kernel_size,
                              kernel_num=kernel_num, key=k_w)
    ch, fl, sp, kn = mod(x)
    jax.block_until_ready((ch, fl, sp, kn))

    assert ch.shape == (B, C_in, 1, 1)
    assert fl.shape == (B, out_planes, 1, 1)
    assert sp.shape == (B, 1, 1, 1, kernel_size, kernel_size)
    assert kn.shape == (B, kernel_num, 1, 1, 1, 1)
    # attentions are sigmoids -> in (0, 1)
    assert bool(jnp.all((ch > 0) & (ch < 1)))
    assert bool(jnp.all((fl > 0) & (fl < 1)))
    assert bool(jnp.all((sp > 0) & (sp < 1)))
    # kernel attention is a softmax over dim 1 -> rows sum to 1
    assert jnp.allclose(jnp.sum(kn, axis=1), 1.0, atol=1e-5)
    assert bool(jnp.all(jnp.isfinite(jnp.concatenate(
        [ch.ravel(), fl.ravel(), sp.ravel(), kn.ravel()]))))

    print("KERNEL_OK")
</pallas_src>

<mosaic_0001>
module attributes {stable_mosaic.version = 11 : i64} {
  func.func @_omni_attention_kernel(%arg0: i32, %arg1: i32, %arg2: memref<2x4x256xf32, #tpu.memory_space<vmem>>, %arg3: memref<4x16xf32, #tpu.memory_space<vmem>>, %arg4: memref<1x16xf32, #tpu.memory_space<vmem>>, %arg5: memref<16x128xf32, #tpu.memory_space<vmem>>, %arg6: memref<1x128xf32, #tpu.memory_space<vmem>>, %arg7: memref<1xf32, #tpu.memory_space<smem>>, %arg8: memref<2x128xf32, #tpu.memory_space<vmem>>, %arg9: memref<2x4x128xf32, #tpu.memory_space<vmem>>) attributes {dimension_semantics = [#tpu.dimension_semantics<parallel>, #tpu.dimension_semantics<arbitrary>], iteration_bounds = array<i64: 1, 1>, scalar_prefetch = 0 : i64, scratch_operands = 1 : i64, tpu.core_type = #tpu.core_type<tc>, window_params = [{transform_indices = @transform_0, window_bounds = array<i64: 2, 4, 256>}, {pipeline_mode = #tpu.pipeline_mode<synchronous>, transform_indices = @transform_1, window_bounds = array<i64: 4, 16>}, {pipeline_mode = #tpu.pipeline_mode<synchronous>, transform_indices = @transform_2, window_bounds = array<i64: 1, 16>}, {pipeline_mode = #tpu.pipeline_mode<synchronous>, transform_indices = @transform_3, window_bounds = array<i64: 16, 128>}, {pipeline_mode = #tpu.pipeline_mode<synchronous>, transform_indices = @transform_4, window_bounds = array<i64: 1, 128>}, {transform_indices = @transform_5, window_bounds = array<i64: 1>}, {transform_indices = @transform_6, window_bounds = array<i64: 2, 128>}]} {
    %c0_i32 = arith.constant 0 : i32
    %0 = arith.cmpi eq, %arg1, %c0_i32 : i32
    %1 = arith.extui %0 : i1 to i32
    %c0_i32_0 = arith.constant 0 : i32
    %2 = arith.cmpi ne, %1, %c0_i32_0 : i32
    scf.if %2 {
      %cst = arith.constant 0.000000e+00 : f32
      %14 = vector.broadcast %cst : f32 to vector<2x4x128xf32>
      %c0_19 = arith.constant 0 : index
      %c0_20 = arith.constant 0 : index
      %c0_21 = arith.constant 0 : index
      %15 = vector.load %arg9[%c0_19, %c0_20, %c0_21] : memref<2x4x128xf32, #tpu.memory_space<vmem>>, vector<2x4x128xf32>
      tpu.vector_store %arg9[%c0_19, %c0_20, %c0_21], %14 {strides = array<i32>} : memref<2x4x128xf32, #tpu.memory_space<vmem>>, vector<2x4x128xf32>,
    } else {
    }
    %c0 = arith.constant 0 : index
    %c0_1 = arith.constant 0 : index
    %c0_2 = arith.constant 0 : index
    %3 = vector.load %arg2[%c0, %c0_1, %c0_2] : memref<2x4x256xf32, #tpu.memory_space<vmem>>, vector<2x4x128xf32>
    %c0_3 = arith.constant 0 : index
    %c0_4 = arith.constant 0 : index
    %c0_5 = arith.constant 0 : index
    %4 = vector.load %arg9[%c0_3, %c0_4, %c0_5] : memref<2x4x128xf32, #tpu.memory_space<vmem>>, vector<2x4x128xf32>
    %5 = arith.addf %4, %3 : vector<2x4x128xf32>
    %c0_6 = arith.constant 0 : index
    %c0_7 = arith.constant 0 : index
    %c0_8 = arith.constant 0 : index
    %6 = vector.load %arg9[%c0_6, %c0_7, %c0_8] : memref<2x4x128xf32, #tpu.memory_space<vmem>>, vector<2x4x128xf32>
    tpu.vector_store %arg9[%c0_6, %c0_7, %c0_8], %5 {strides = array<i32>} : memref<2x4x128xf32, #tpu.memory_space<vmem>>, vector<2x4x128xf32>,
    %c0_9 = arith.constant 0 : index
    %c0_10 = arith.constant 0 : index
    %c128 = arith.constant 128 : index
    %7 = vector.load %arg2[%c0_9, %c0_10, %c128] : memref<2x4x256xf32, #tpu.memory_space<vmem>>, vector<2x4x128xf32>
    %c0_11 = arith.constant 0 : index
    %c0_12 = arith.constant 0 : index
    %c0_13 = arith.constant 0 : index
    %8 = vector.load %arg9[%c0_11, %c0_12, %c0_13] : memref<2x4x128xf32, #tpu.memory_space<vmem>>, vector<2x4x128xf32>
    %9 = arith.addf %8, %7 : vector<2x4x128xf32>
    %c0_14 = arith.constant 0 : index
    %c0_15 = arith.constant 0 : index
    %c0_16 = arith.constant 0 : index
    %10 = vector.load %arg9[%c0_14, %c0_15, %c0_16] : memref<2x4x128xf32, #tpu.memory_space<vmem>>, vector<2x4x128xf32>
    tpu.vector_store %arg9[%c0_14, %c0_15, %c0_16], %9 {strides = array<i32>} : memref<2x4x128xf32, #tpu.memory_space<vmem>>, vector<2x4x128xf32>,
    %c0_i32_17 = arith.constant 0 : i32
    %11 = arith.cmpi eq, %arg1, %c0_i32_17 : i32
    %12 = arith.extui %11 : i1 to i32
    %c0_i32_18 = arith.constant 0 : i32
    %13 = arith.cmpi ne, %12, %c0_i32_18 : i32
    scf.if %13 {
      %c0_19 = arith.constant 0 : index
      %c0_20 = arith.constant 0 : index
      %c0_21 = arith.constant 0 : index
      %14 = vector.load %arg9[%c0_19, %c0_20, %c0_21] : memref<2x4x128xf32, #tpu.memory_space<vmem>>, vector<2x4x128xf32>
      %cst = arith.constant dense<0.000000e+00> : vector<2x4xf32>
      %15 = vector.multi_reduction <add>, %14, %cst [2] : vector<2x4x128xf32> to vector<2x4xf32>
      %cst_22 = arith.constant 3.906250e-03 : f32
      %16 = vector.broadcast %cst_22 : f32 to vector<2x4xf32>
      %17 = arith.mulf %15, %16 : vector<2x4xf32>
      %c0_23 = arith.constant 0 : index
      %c0_24 = arith.constant 0 : index
      %18 = vector.load %arg3[%c0_23, %c0_24] : memref<4x16xf32, #tpu.memory_space<vmem>>, vector<4x16xf32>
      %cst_25 = arith.constant dense<0.000000e+00> : vector<2x16xf32>
      %19 = tpu.matmul %17, %18, %cst_25 {dimension_numbers = #tpu.dot_dimension_numbers<[1], [0], [0], [1], [0, 0, 1, 1], [], []>} : vector<2x4xf32>, vector<4x16xf32>, vector<2x16xf32> -> vector<2x16xf32>
      %c0_26 = arith.constant 0 : index
      %c0_27 = arith.constant 0 : index
      %20 = vector.load %arg4[%c0_26, %c0_27] : memref<1x16xf32, #tpu.memory_space<vmem>>, vector<1x16xf32>
      %21 = vector.broadcast %20 : vector<1x16xf32> to vector<2x16xf32>
      %22 = arith.addf %19, %21 : vector<2x16xf32>
      %cst_28 = arith.constant 0.000000e+00 : f32
      %23 = vector.broadcast %cst_28 : f32 to vector<2x16xf32>
      %24 = arith.maximumf %22, %23 : vector<2x16xf32>
      %c0_29 = arith.constant 0 : index
      %c0_30 = arith.constant 0 : index
      %25 = vector.load %arg5[%c0_29, %c0_30] : memref<16x128xf32, #tpu.memory_space<vmem>>, vector<16x128xf32>
      %cst_31 = arith.constant dense<0.000000e+00> : vector<2x128xf32>
      %26 = tpu.matmul %24, %25, %cst_31 {dimension_numbers = #tpu.dot_dimension_numbers<[1], [0], [0], [1], [0, 0, 1, 1], [], []>} : vector<2x16xf32>, vector<16x128xf32>, vector<2x128xf32> -> vector<2x128xf32>
      %c0_32 = arith.constant 0 : index
      %c0_33 = arith.constant 0 : index
      %27 = vector.load %arg6[%c0_32, %c0_33] : memref<1x128xf32, #tpu.memory_space<vmem>>, vector<1x128xf32>
      %28 = vector.broadcast %27 : vector<1x128xf32> to vector<2x128xf32>
      %29 = arith.addf %26, %28 : vector<2x128xf32>
      %c0_34 = arith.constant 0 : index
      %30 = memref.load %arg7[%c0_34] : memref<1xf32, #tpu.memory_space<smem>>
      %31 = vector.broadcast %30 : f32 to vector<2x128xf32>
      %32 = arith.mulf %29, %31 : vector<2x128xf32>
      %33 = tpu.iota {dimensions = array<i32: 1>} : vector<2x128xi32>
      %c21_i32 = arith.constant 21 : i32
      %34 = vector.broadcast %c21_i32 : i32 to vector<2x128xi32>
      %35 = arith.cmpi sge, %33, %34 : vector<2x128xi32>
      %c25_i32 = arith.constant 25 : i32
      %36 = vector.broadcast %c25_i32 : i32 to vector<2x128xi32>
      %37 = arith.cmpi slt, %33, %36 : vector<2x128xi32>
      %38 = arith.andi %35, %37 : vector<2x128xi1>
      %cst_35 = arith.constant 0xFF800000 : f32
      %39 = vector.broadcast %cst_35 : f32 to vector<2x128xf32>
      %40 = arith.select %38, %32, %39 : vector<2x128xi1>, vector<2x128xf32>
      %cst_36 = arith.constant dense<0xFF800000> : vector<2xf32>
      %41 = vector.multi_reduction <maximumf>, %40, %cst_36 [1] : vector<2x128xf32> to vector<2xf32>
      %42 = vector.shape_cast %41 : vector<2xf32> to vector<2x1xf32>
      %43 = vector.broadcast %42 : vector<2x1xf32> to vector<2x128xf32>
      %44 = arith.subf %40, %43 : vector<2x128xf32>
      %45 = math.exp %44 : vector<2x128xf32>
      %cst_37 = arith.constant 0.000000e+00 : f32
      %46 = vector.broadcast %cst_37 : f32 to vector<2x128xf32>
      %47 = arith.select %38, %45, %46 : vector<2x128xi1>, vector<2x128xf32>
      %cst_38 = arith.constant dense<0.000000e+00> : vector<2xf32>
      %48 = vector.multi_reduction <add>, %47, %cst_38 [1] : vector<2x128xf32> to vector<2xf32>
      %49 = vector.shape_cast %48 : vector<2xf32> to vector<2x1xf32>
      %50 = vector.broadcast %49 : vector<2x1xf32> to vector<2x128xf32>
      %51 = arith.divf %47, %50 : vector<2x128xf32>
      %52 = arith.negf %32 : vector<2x128xf32>
      %53 = math.exp %52 : vector<2x128xf32>
      %cst_39 = arith.constant 1.000000e+00 : f32
      %54 = vector.broadcast %cst_39 : f32 to vector<2x128xf32>
      %55 = arith.addf %54, %53 : vector<2x128xf32>
      %56 = arith.divf %54, %55 : vector<2x128xf32>
      %57 = arith.select %38, %51, %56 : vector<2x128xi1>, vector<2x128xf32>
      %c0_40 = arith.constant 0 : index
      %c0_41 = arith.constant 0 : index
      %58 = vector.load %arg8[%c0_40, %c0_41] : memref<2x128xf32, #tpu.memory_space<vmem>>, vector<2x128xf32>
      tpu.vector_store %arg8[%c0_40, %c0_41], %57 {strides = array<i32>} : memref<2x128xf32, #tpu.memory_space<vmem>>, vector<2x128xf32>,
    } else {
    }
    return
  }
  func.func @transform_0(%arg0: i32, %arg1: i32) -> (i32, i32, i32) {
    %c0_i32 = arith.constant 0 : i32
    %c0_i32_0 = arith.constant 0 : i32
    return %arg0, %c0_i32, %arg1 : i32, i32, i32
  }
  func.func @transform_1(%arg0: i32, %arg1: i32) -> (i32, i32) {
    %c0_i32 = arith.constant 0 : i32
    %c0_i32_0 = arith.constant 0 : i32
    %c0_i32_1 = arith.constant 0 : i32
    return %c0_i32, %c0_i32_0 : i32, i32
  }
  func.func @transform_2(%arg0: i32, %arg1: i32) -> (i32, i32) {
    %c0_i32 = arith.constant 0 : i32
    %c0_i32_0 = arith.constant 0 : i32
    %c0_i32_1 = arith.constant 0 : i32
    return %c0_i32, %c0_i32_0 : i32, i32
  }
  func.func @transform_3(%arg0: i32, %arg1: i32) -> (i32, i32) {
    %c0_i32 = arith.constant 0 : i32
    %c0_i32_0 = arith.constant 0 : i32
    %c0_i32_1 = arith.constant 0 : i32
    return %c0_i32, %c0_i32_0 : i32, i32
  }
  func.func @transform_4(%arg0: i32, %arg1: i32) -> (i32, i32) {
    %c0_i32 = arith.constant 0 : i32
    %c0_i32_0 = arith.constant 0 : i32
    %c0_i32_1 = arith.constant 0 : i32
    return %c0_i32, %c0_i32_0 : i32, i32
  }
  func.func @transform_5(%arg0: i32, %arg1: i32) -> i32 {
    %c0_i32 = arith.constant 0 : i32
    %c0_i32_0 = arith.constant 0 : i32
    return %c0_i32 : i32
  }
  func.func @transform_6(%arg0: i32, %arg1: i32) -> (i32, i32) {
    %c0_i32 = arith.constant 0 : i32
    %c0_i32_0 = arith.constant 0 : i32
    return %arg0, %c0_i32 : i32, i32
  }
}

</mosaic_0001>

<llo_original>
// kernel: tpu_custom_call.1
$region0: #{tpu_custom_call.1}
  #allocation0 [shape = 'u32[]', space=smem, size = 0x4, offset = 0x4, fixed_abs, tag = 'smem constant byte address 0x4 - core index']
  #allocation1 [shape = 'u32[144,128]{1,0:T(1,128)}', space=vmem, size = 0x12000, scoped, tag = 'internal scratch']
  #allocation2 [shape = 'f32[2,4,128]{2,1,0:T(4,128)}', space=vmem, size = 0x1000, scoped, tag = 'scratch operand']
  #allocation3 [shape = 'f32[1]{0:T(128)S(6)}', space=smem, size = 0x200, scoped, tag = 'scoped memory for tpu_custom_call.1']
  %s0 = inlined_call_operand.hbm [shape: f32[2,4,256], index: 0, kind: input, shape index: {}]
  %s1 = inlined_call_operand.vmem [shape: f32[4,16], index: 1, kind: input, shape index: {}]
  %s2 = inlined_call_operand.vmem [shape: f32[1,16], index: 2, kind: input, shape index: {}]
  %s3 = inlined_call_operand.hbm [shape: f32[16,128], index: 3, kind: input, shape index: {}]
  %s4 = inlined_call_operand.vmem [shape: f32[1,128], index: 4, kind: input, shape index: {}]
  %s5 = inlined_call_operand.<no memory space> [shape: f32[1], index: 5, kind: input, shape index: {}]
  %s6 = inlined_call_operand.hbm [shape: f32[2,128], index: 6, kind: output, shape index: {}]
  %s7 = sld [smem:[#allocation0]]
  $region50: #{tpu_custom_call.1} parent=0
    _
  %s9 = ssub.s32 1, %s7
  %s10 = scalar_select 0, %s9, %s7
  %11 = sst [smem:[#allocation3]] %s5
  $region1: #{tpu_custom_call.1} parent=0
    #allocation4 [shape = 'u8[8192]{0}', space=vmem, size = 0x2000, scoped, tag = 'input window, operand 0, single buffered']
    #allocation5 [shape = 's32[1]{0}', space=sflag, size = 0x4, scoped, tag = 'scoped memory for tpu_custom_call.1']
    #allocation6 [shape = 's32[1]{0}', space=sflag, size = 0x4, scoped, tag = 'scoped memory for tpu_custom_call.1']
    #allocation7 [shape = 'u8[8192]{0}', space=vmem, size = 0x2000, scoped, tag = 'input window, operand 3, single buffered']
    #allocation8 [shape = 's32[1]{0}', space=sflag, size = 0x4, scoped, tag = 'scoped memory for tpu_custom_call.1']
    #allocation9 [shape = 'u8[1024]{0}', space=vmem, size = 0x400, scoped, tag = 'output window, operand 0, single buffered']
    %12 = vsyncpa [#allocation5], 0
    %13 = vsyncpa [#allocation8], 0
    %14 = vsyncpa [#allocation6], 0
    // Predicated region
    $region2: #{tpu_custom_call.1} parent=1 // pred_check
      _
    $region3: #{tpu_custom_call.1} parent=1 // pred_check_branch
      %16 = sbr.rel (0) target = $region5
    $region4: #{tpu_custom_call.1} parent=1 // pred_region
      %s18 = ssub.s32 256, 256
      %19 = vsyncadd [#allocation5], %s18
      %s20 = sshll.u32 [#allocation4], 4
      %s21 = int_to_ptr.vmem [resolvable:$true] %s20
      %26 = dma.hbm_to_vmem [thread:$0]  %s0, 256, %s21, [#allocation5], 128, 128, 8
    $region5: #{tpu_custom_call.1} parent=1 // pred_fallthru
      _
    // Predicated region
    $region6: #{tpu_custom_call.1} parent=1 // pred_check
      _
    $region7: #{tpu_custom_call.1} parent=1 // pred_check_branch
      %28 = sbr.rel (0) target = $region9
    $region8: #{tpu_custom_call.1} parent=1 // pred_region
      _
    $region9: #{tpu_custom_call.1} parent=1 // pred_fallthru
      _
    // Predicated region
    $region10: #{tpu_custom_call.1} parent=1 // pred_check
      _
    $region11: #{tpu_custom_call.1} parent=1 // pred_check_branch
      %30 = sbr.rel (0) target = $region13
    $region12: #{tpu_custom_call.1} parent=1 // pred_region
      _
    $region13: #{tpu_custom_call.1} parent=1 // pred_fallthru
      _
    // Predicated region
    $region14: #{tpu_custom_call.1} parent=1 // pred_check
      _
    $region15: #{tpu_custom_call.1} parent=1 // pred_check_branch
      %32 = sbr.rel (0) target = $region17
    $region16: #{tpu_custom_call.1} parent=1 // pred_region
      %s34 = ssub.s32 256, 256
      %35 = vsyncadd [#allocation8], %s34
      %s36 = sshll.u32 [#allocation7], 4
      %s37 = int_to_ptr.vmem [resolvable:$true] %s36
      %42 = dma.hbm_to_vmem [thread:$0]  %s3, 256, %s37, [#allocation8], 128, 128, 8
    $region17: #{tpu_custom_call.1} parent=1 // pred_fallthru
      _
    // Predicated region
    $region18: #{tpu_custom_call.1} parent=1 // pred_check
      _
    $region19: #{tpu_custom_call.1} parent=1 // pred_check_branch
      %44 = sbr.rel (0) target = $region21
    $region20: #{tpu_custom_call.1} parent=1 // pred_region
      _
    $region21: #{tpu_custom_call.1} parent=1 // pred_fallthru
      _
    // Predicated region
    $region22: #{tpu_custom_call.1} parent=1 // pred_check
      _
    $region23: #{tpu_custom_call.1} parent=1 // pred_check_branch
      %46 = sbr.rel (0) target = $region25
    $region24: #{tpu_custom_call.1} parent=1 // pred_region
      _
    $region25: #{tpu_custom_call.1} parent=1 // pred_fallthru
      _
    // Predicated region
    $region26: #{tpu_custom_call.1} parent=1 // pred_check
      _
    $region27: #{tpu_custom_call.1} parent=1 // pred_check_branch
      %48 = sbr.rel (0) target = $region29
    $region28: #{tpu_custom_call.1} parent=1 // pred_region
      %49 = dma.done [#allocation5], 256
    $region29: #{tpu_custom_call.1} parent=1 // pred_fallthru
      _
    // Predicated region
    $region30: #{tpu_custom_call.1} parent=1 // pred_check
      _
    $region31: #{tpu_custom_call.1} parent=1 // pred_check_branch
      %51 = sbr.rel (0) target = $region33
    $region32: #{tpu_custom_call.1} parent=1 // pred_region
      %52 = dma.done [#allocation8], 256
    $region33: #{tpu_custom_call.1} parent=1 // pred_fallthru
      _
    %p53 = scmp.eq.s32.totalorder 0, 0
    // Predicated region
    $region34: #{tpu_custom_call.1} parent=1 // pred_check
      %p54 = pneg %p53
    $region35: #{tpu_custom_call.1} parent=1 // pred_check_branch
      %56 = sbr.rel (%p54) target = $region37
    $region36: #{tpu_custom_call.1} parent=1 // pred_region
      %57 = vst [vmem:[#allocation2] sm:$0xf] 0.0
      %58 = vst [vmem:[#allocation2 + $0x4] sm:$0xf] 0.0
    $region37: #{tpu_custom_call.1} parent=1 // pred_fallthru
      _
    %v59 = vld [vmem:[#allocation4] sm:$0xf]
    %v60 = vld [vmem:[#allocation4 + $0x8] sm:$0xf]
    %v61 = vld [vmem:[#allocation2] sm:$0xf]
    %v62 = vld [vmem:[#allocation2 + $0x4] sm:$0xf]
    %v63 = vadd.f32 %v61, %v59
    %v64 = vadd.f32 %v62, %v60
    %65 = vst [vmem:[#allocation2] sm:$0xf] %v63
    %66 = vst [vmem:[#allocation2 + $0x4] sm:$0xf] %v64
    %v67 = vld [vmem:[#allocation4 + $0x4] sm:$0xf]
    %v68 = vld [vmem:[#allocation4 + $0xc] sm:$0xf]
    %v69 = vld [vmem:[#allocation2] sm:$0xf]
    %v70 = vld [vmem:[#allocation2 + $0x4] sm:$0xf]
    %v71 = vadd.f32 %v69, %v67
    %v72 = vadd.f32 %v70, %v68
    %73 = vst [vmem:[#allocation2] sm:$0xf] %v71
    %74 = vst [vmem:[#allocation2 + $0x4] sm:$0xf] %v72
    // Predicated region
    $region38: #{tpu_custom_call.1} parent=1 // pred_check
      %p75 = pneg %p53
    $region39: #{tpu_custom_call.1} parent=1 // pred_check_branch
      %77 = sbr.rel (%p75) target = $region41
    $region40: #{tpu_custom_call.1} parent=1 // pred_region
      %v78 = vld [vmem:[#allocation2] sm:$0xf]
      %v79 = vld [vmem:[#allocation2 + $0x4] sm:$0xf]
      %vm80 = vcmask 1043456
      %v81 = vsel %vm80, %v78, 0.0
      %82 = vadd.xlane.f32.xlu0 %v81
      %v83 = vpop.xlane.xlu0 %82
      %v84 = vsel %vm80, %v79, 0.0
      %85 = vadd.xlane.f32.xlu0 %v84
      %v86 = vpop.xlane.xlu0 %85
      %v87 = vmul.f32 %v83, 0.00390625
      %v88 = vmul.f32 %v86, 0.00390625
      %v89 = vld [vmem:[%s1] sm:$0xf]
      %v90 = vld [vmem:[%s2] sm:$0x1]
      %v92 = vlaneseq
      %v93 = vshrl.u32 %v92, 7
      %v94 = vsub.s32 0, %v93
      %v95 = vrot.slane %v90, %v94
      %v99 = vlaneseq
      %v100 = vand.u32 %v99, 127
      %v101 = vlaneseq
      %v102 = vshrl.u32 %v101, 7
      %v103 = vsub.s32 %v100, %v102
      %v104 = vrot.slane %v87, %v103
      %v105 = vlaneseq
      %v106 = vshrl.u32 %v105, 7
      %v107 = vsub.s32 %v100, %v106
      %v108 = vrot.slane %v88, %v107
      %vm109 = vcmask 1041409
      %v110 = vsel %vm109, %v108, %v104
      %vm111 = vcmask 31744
      %v112 = vsel %vm111, %v110, 0
      %v115 = vsel %vm80, %v89, 0
      %117 = vmatprep.subr.mxu0 0.0
      %118 = vmatpush1.msra.mxu0 %v115
      %119 = vmatprep.subr.mxu0 0.0
      %120 = vmatpush1.msra.mxu0 0.0
      %121 = vmatprep.subr.mxu0 0.0
      %122 = vmatpush1.msra.mxu0 0.0
      %123 = vmatprep.subr.mxu0 0.0
      %124 = vmatpush1.msra.mxu0 0.0
      %125 = vmatprep.subr.mxu0 0.0
      %126 = vmatpush1.msra.mxu0 0.0
      %127 = vmatprep.subr.mxu0 0.0
      %128 = vmatpush1.msra.mxu0 0.0
      %129 = vmatprep.subr.mxu0 0.0
      %130 = vmatpush1.msra.mxu0 0.0
      %131 = vmatprep.subr.mxu0 0.0
      %132 = vmatpush1.msra.mxu0 0.0
      %133 = vmatprep.subr.mxu0 0.0
      %134 = vmatpush1.msra.mxu0 0.0
      %135 = vmatprep.subr.mxu0 0.0
      %136 = vmatpush1.msra.mxu0 0.0
      %137 = vmatprep.subr.mxu0 0.0
      %138 = vmatpush1.msra.mxu0 0.0
      %139 = vmatprep.subr.mxu0 0.0
      %140 = vmatpush1.msra.mxu0 0.0
      %141 = vmatprep.subr.mxu0 0.0
      %142 = vmatpush1.msra.mxu0 0.0
      %143 = vmatprep.subr.mxu0 0.0
      %144 = vmatpush1.msra.mxu0 0.0
      %145 = vmatprep.subr.mxu0 0.0
      %146 = vmatpush1.msra.mxu0 0.0
      %147 = vmatprep.subr.mxu0 0.0
      %148 = vmatpush1.msra.mxu0 0.0
      %149 = vmatprep.subr.mxu0 0.0
      %150 = vmatpush1.msra.mxu0 0.0
      %151 = vmatprep.subr.mxu0 0.0
      %152 = vmatpush1.msra.mxu0 0.0
      %153 = vmatprep.subr.mxu0 0.0
      %154 = vmatpush1.msra.mxu0 0.0
      %155 = vmatprep.subr.mxu0 0.0
      %156 = vmatpush1.msra.mxu0 0.0
      %157 = vmatprep.subr.mxu0 0.0
      %158 = vmatpush1.msra.mxu0 0.0
      %159 = vmatprep.subr.mxu0 0.0
      %160 = vmatpush1.msra.mxu0 0.0
      %161 = vmatprep.subr.mxu0 0.0
      %162 = vmatpush1.msra.mxu0 0.0
      %163 = vmatprep.subr.mxu0 0.0
      %164 = vmatpush1.msra.mxu0 0.0
      %165 = vmatprep.subr.mxu0 0.0
      %166 = vmatpush1.msra.mxu0 0.0
      %167 = vmatprep.subr.mxu0 0.0
      %168 = vmatpush1.msra.mxu0 0.0
      %169 = vmatprep.subr.mxu0 0.0
      %170 = vmatpush1.msra.mxu0 0.0
      %171 = vmatprep.subr.mxu0 0.0
      %172 = vmatpush1.msra.mxu0 0.0
      %173 = vmatprep.subr.mxu0 0.0
      %174 = vmatpush1.msra.mxu0 0.0
      %175 = vmatprep.subr.mxu0 0.0
      %176 = vmatpush1.msra.mxu0 0.0
      %177 = vmatprep.subr.mxu0 0.0
      %178 = vmatpush1.msra.mxu0 0.0
      %179 = vmatprep.subr.mxu0 0.0
      %180 = vmatpush1.msra.mxu0 0.0
      %181 = vmatprep.mubr.f32.mxu0 0.0
      %182 = vmatmul.mubr.f32.gmra.mrb[0].mxu0 %v112
      %v183 = vpop.f32.mrb[0].mxu0
      %v184 = vadd.f32 %v95, %v183
      %v185 = vpop.f32.mrb[0].mxu0
      %186 = vdwg.mxu0
      %v187 = vmax.f32 %v184, 0.0
      %v188 = vld [vmem:[#allocation7] sm:$0xff]
      %v189 = vld [vmem:[#allocation7 + $0x8] sm:$0xff]
      %v190 = vld [vmem:[%s4] sm:$0x1]
      %v192 = vlaneseq
      %v193 = vshrl.u32 %v192, 7
      %v194 = vsub.s32 0, %v193
      %v195 = vrot.slane %v190, %v194
      %vm197 = vcmask 130048
      %v199 = vsel %vm197, %v187, 0
      %201 = vmatprep.subr.mxu0 0.0
      %202 = vmatpush1.msra.mxu0 %v188
      %203 = vmatprep.subr.mxu0 0.0
      %204 = vmatpush1.msra.mxu0 %v189
      %205 = vmatprep.subr.mxu0 0.0
      %206 = vmatpush1.msra.mxu0 0.0
      %207 = vmatprep.subr.mxu0 0.0
      %208 = vmatpush1.msra.mxu0 0.0
      %209 = vmatprep.subr.mxu0 0.0
      %210 = vmatpush1.msra.mxu0 0.0
      %211 = vmatprep.subr.mxu0 0.0
      %212 = vmatpush1.msra.mxu0 0.0
      %213 = vmatprep.subr.mxu0 0.0
      %214 = vmatpush1.msra.mxu0 0.0
      %215 = vmatprep.subr.mxu0 0.0
      %216 = vmatpush1.msra.mxu0 0.0
      %217 = vmatprep.subr.mxu0 0.0
      %218 = vmatpush1.msra.mxu0 0.0
      %219 = vmatprep.subr.mxu0 0.0
      %220 = vmatpush1.msra.mxu0 0.0
      %221 = vmatprep.subr.mxu0 0.0
      %222 = vmatpush1.msra.mxu0 0.0
      %223 = vmatprep.subr.mxu0 0.0
      %224 = vmatpush1.msra.mxu0 0.0
      %225 = vmatprep.subr.mxu0 0.0
      %226 = vmatpush1.msra.mxu0 0.0
      %227 = vmatprep.subr.mxu0 0.0
      %228 = vmatpush1.msra.mxu0 0.0
      %229 = vmatprep.subr.mxu0 0.0
      %230 = vmatpush1.msra.mxu0 0.0
      %231 = vmatprep.subr.mxu0 0.0
      %232 = vmatpush1.msra.mxu0 0.0
      %233 = vmatprep.subr.mxu0 0.0
      %234 = vmatpush1.msra.mxu0 0.0
      %235 = vmatprep.subr.mxu0 0.0
      %236 = vmatpush1.msra.mxu0 0.0
      %237 = vmatprep.subr.mxu0 0.0
      %238 = vmatpush1.msra.mxu0 0.0
      %239 = vmatprep.subr.mxu0 0.0
      %240 = vmatpush1.msra.mxu0 0.0
      %241 = vmatprep.subr.mxu0 0.0
      %242 = vmatpush1.msra.mxu0 0.0
      %243 = vmatprep.subr.mxu0 0.0
      %244 = vmatpush1.msra.mxu0 0.0
      %245 = vmatprep.subr.mxu0 0.0
      %246 = vmatpush1.msra.mxu0 0.0
      %247 = vmatprep.subr.mxu0 0.0
      %248 = vmatpush1.msra.mxu0 0.0
      %249 = vmatprep.subr.mxu0 0.0
      %250 = vmatpush1.msra.mxu0 0.0
      %251 = vmatprep.subr.mxu0 0.0
      %252 = vmatpush1.msra.mxu0 0.0
      %253 = vmatprep.subr.mxu0 0.0
      %254 = vmatpush1.msra.mxu0 0.0
      %255 = vmatprep.subr.mxu0 0.0
      %256 = vmatpush1.msra.mxu0 0.0
      %257 = vmatprep.subr.mxu0 0.0
      %258 = vmatpush1.msra.mxu0 0.0
      %259 = vmatprep.subr.mxu0 0.0
      %260 = vmatpush1.msra.mxu0 0.0
      %261 = vmatprep.subr.mxu0 0.0
      %262 = vmatpush1.msra.mxu0 0.0
      %263 = vmatprep.subr.mxu0 0.0
      %264 = vmatpush1.msra.mxu0 0.0
      %265 = vmatprep.mubr.f32.mxu0 0.0
      %266 = vmatmul.mubr.f32.gmra.mrb[0].mxu0 %v199
      %v267 = vpop.f32.mrb[0].mxu0
      %v268 = vadd.f32 %v195, %v267
      %v269 = vpop.f32.mrb[0].mxu0
      %270 = vdwg.mxu0
      %s271 = sld [smem:[#allocation3]]
      %v272 = vstv %s271
      %v273 = vmul.f32 %v268, %v272
      %vm274 = vcmp.ge.s32.totalorder %v100, 21
      %vm275 = vcmp.lt.s32.totalorder %v100, 25
      %vm276 = vmand %vm274, %vm275
      %v277 = vsel %vm276, %v273, -inf
      %vm278 = vcmask 1041408
      %v279 = vsel %vm278, %v277, -inf
      %280 = vmax.xlane.f32.xlu0 %v279
      %v281 = vpop.xlane.xlu0 %280
      %v282 = vsub.f32 %v277, %v281
      %v283 = vmul.f32 %v282, 1.442695
      %v284 = vpow.pop %v283
      %v285 = vsel %vm276, %v284, 0.0
      %v286 = vsel %vm278, %v285, 0.0
      %287 = vadd.xlane.f32.xlu0 %v286
      %v288 = vpop.xlane.xlu0 %287
      %v289 = vrcp.pop %v288
      %v290 = vmul.f32 %v285, %v289
      %v291 = vxor.u32 %v273, 2147483648
      %v292 = vmul.f32 %v291, 1.442695
      %v293 = vpow.pop %v292
      %v294 = vadd.f32 %v293, 1.0
      %v295 = vrcp.pop %v294
      %v296 = vmul.f32 1.0, %v295
      %v297 = vsel %vm276, %v290, %v296
      %298 = vst [vmem:[#allocation9] sm:$0x3] %v297
    $region41: #{tpu_custom_call.1} parent=1 // pred_fallthru
      _
    // Predicated region
    $region42: #{tpu_custom_call.1} parent=1 // pred_check
      _
    $region43: #{tpu_custom_call.1} parent=1 // pred_check_branch
      %300 = sbr.rel (0) target = $region45
    $region44: #{tpu_custom_call.1} parent=1 // pred_region
      %s302 = ssub.s32 32, 32
      %303 = vsyncadd [#allocation6], %s302
      %s305 = sshll.u32 [#allocation9], 4
      %s306 = int_to_ptr.vmem [resolvable:$true] %s305
      %308 = dma.vmem_to_hbm [thread:$0]  %s306, 32, %s6, [#allocation6]
    $region45: #{tpu_custom_call.1} parent=1 // pred_fallthru
      _
    // Predicated region
    $region46: #{tpu_custom_call.1} parent=1 // pred_check
      _
    $region47: #{tpu_custom_call.1} parent=1 // pred_check_branch
      %310 = sbr.rel (0) target = $region49
    $region48: #{tpu_custom_call.1} parent=1 // pred_region
      %311 = dma.done [#allocation6], 32
    $region49: #{tpu_custom_call.1} parent=1 // pred_fallthru
      _
    %312 = vsyncpa [#allocation5], 1
    %313 = vsyncpa [#allocation8], 1
    %314 = vsyncpa [#allocation6], 1

</llo_original>
